<compile_context>
chip_gen: v5e
topology: v5e:2x2
jax: 0.10.0
libtpu: 0.0.40
codegen_flags: <defaults>
</compile_context>

<pallas_src>
import jax
import jax.numpy as jnp
from jax import lax
from jax.experimental import pallas as pl
from jax.experimental.pallas import tpu as pltpu

# ----- model hyperparameters (match the PyTorch __init__ defaults) -----
NUM_NODE_FEATURES = 8
C1, C2, C3 = 16, 32, 32
GAT_OUT, HEADS = 32, 4
GAT_DIM = GAT_OUT * HEADS          # 128
BN_EPS = 1e-5
LEAKY_SLOPE = 0.2                  # GATConv default negative_slope
N_NODES = 16                       # small synthetic graph

# ----- packed-parameter slab layout (rows of a (SLAB_ROWS, 128) f32 slab) -----
# weight blocks start on 8-sublane boundaries; row-vector params share one 8-row group.
_R_W1 = 0                          # (8,  C1)   BN1-folded conv1 weight
_R_W2 = 8                          # (C1, C2)   BN2-folded conv2 weight
_R_W3 = 24                         # (C2, C3)   BN3-folded conv3 weight
_R_WG = 56                         # (C3, 128)  GAT weight (all heads)
_R_B1 = 88                         # (1, C1)    BN1-folded conv1 bias
_R_B2 = 89                         # (1, C2)
_R_B3 = 90                         # (1, C3)
_R_S4 = 91                         # (1, 128)   BN4 folded scale
_R_SH4 = 92                        # (1, 128)   BN4 folded shift (includes GAT bias)
_R_WL = 93                         # (1, 128)   final linear weight (transposed)
_R_BL = 94                         # scalar at lane 0: final linear bias
_R_ASRC = 96                       # (HEADS, 128) block-diag src attention vectors
_R_ADST = 100                      # (HEADS, 128) block-diag dst attention vectors
SLAB_ROWS = 104


# --------------------------------- Pallas kernel ---------------------------------
def gnn_kernel(x_ref, ahat_ref, mask_ref, slab_ref, out_ref, gat_ref):
    x = x_ref[...]                                   # (N, 8)
    ahat = ahat_ref[...]                             # (N, N)
    mask = mask_ref[...]                             # (N, N)

    w1 = slab_ref[_R_W1:_R_W1 + NUM_NODE_FEATURES, 0:C1]
    w2 = slab_ref[_R_W2:_R_W2 + C1, 0:C2]
    w3 = slab_ref[_R_W3:_R_W3 + C2, 0:C3]
    wg = slab_ref[_R_WG:_R_WG + C3, :]               # (C3, 128)
    b1 = slab_ref[_R_B1:_R_B1 + 1, 0:C1]
    b2 = slab_ref[_R_B2:_R_B2 + 1, 0:C2]
    b3 = slab_ref[_R_B3:_R_B3 + 1, 0:C3]
    scale4 = slab_ref[_R_S4:_R_S4 + 1, :]            # (1, 128)
    shift4 = slab_ref[_R_SH4:_R_SH4 + 1, :]          # (1, 128)
    wl_row = slab_ref[_R_WL:_R_WL + 1, :]            # (1, 128)
    bl = slab_ref[_R_BL:_R_BL + 1, 0:1]              # (1, 1)
    a_src = slab_ref[_R_ASRC:_R_ASRC + HEADS, :]     # (HEADS, 128) block-diag
    a_dst = slab_ref[_R_ADST:_R_ADST + HEADS, :]     # (HEADS, 128) block-diag

    def gcn(h, w, b):
        # GCNConv with eval-mode BN folded into (w, b): Ahat @ (h w) + b
        xw = jnp.dot(h, w, preferred_element_type=jnp.float32)
        return jnp.dot(ahat, xw, preferred_element_type=jnp.float32) + b

    # --- three GCN blocks (BN folded, ReLU, dropout = identity in eval) ---
    h = jnp.maximum(gcn(x, w1, b1), 0.0)             # (N, 16)
    h = jnp.maximum(gcn(h, w2, b2), 0.0)             # (N, 32)
    h = h + jnp.maximum(gcn(h, w3, b3), 0.0)         # residual, (N, 32)

    # --- GATConv, heads=4, concat=True: fused value matmul + MXU attention scores ---
    hh = jnp.dot(h, wg, preferred_element_type=jnp.float32)          # (N, 128) all heads
    dims_bt = (((1,), (1,)), ((), ()))                                # contract last dims (A @ B.T)
    # per-head source scores as rows (HEADS, N): lane-major, no transpose needed
    src_rows = lax.dot_general(a_src, hh, dims_bt,
                               preferred_element_type=jnp.float32)    # (HEADS, N)
    # per-head destination scores as columns (N, HEADS)
    dst_cols = lax.dot_general(hh, a_dst, dims_bt,
                               preferred_element_type=jnp.float32)    # (N, HEADS)

    neg_big = jnp.float32(-1e9)
    for hd in range(HEADS):
        lo, hi = hd * GAT_OUT, (hd + 1) * GAT_OUT
        # e[i, j] = leaky_relu(a_dst·Wh_i + a_src·Wh_j) for edge j -> i
        e = dst_cols[:, hd:hd + 1] + src_rows[hd:hd + 1, :]           # (N, N)
        e = jnp.where(e > 0, e, LEAKY_SLOPE * e)
        e = jnp.where(mask > 0, e, neg_big)
        e = e - jnp.max(e, axis=1, keepdims=True)
        p = jnp.exp(e)                                                # masked entries underflow to 0
        alpha = p * (1.0 / jnp.sum(p, axis=1, keepdims=True))         # softmax over incoming edges
        gat_ref[:, lo:hi] = jnp.dot(alpha, hh[:, lo:hi],
                                    preferred_element_type=jnp.float32)

    # --- BN4 (folded scale/shift, includes GAT bias) + ELU ; dropout = identity ---
    z = gat_ref[...] * scale4 + shift4
    z = jnp.where(z > 0, z, jnp.exp(jnp.minimum(z, 0.0)) - 1.0)

    # --- final Linear(128 -> 1), emitted lane-dense as a (1, N) row ---
    out_ref[...] = lax.dot_general(wl_row, z, dims_bt,
                                   preferred_element_type=jnp.float32) + bl


def advanced_gcn_forward(x, ahat, mask, slab):
    n = x.shape[0]
    out_row = pl.pallas_call(
        gnn_kernel,
        out_shape=jax.ShapeDtypeStruct((1, n), jnp.float32),
        scratch_shapes=[pltpu.VMEM((n, GAT_DIM), jnp.float32)],
        compiler_params=pltpu.CompilerParams(vmem_limit_bytes=32 * 1024 * 1024),
    )(x, ahat, mask, slab)
    # TODO(synk): for N >> 16 or batched graphs, add a grid over destination-node tiles /
    # a parallel batch axis instead of whole-array blocks (v7x has only 64 MiB VMEM).
    return out_row.T                                   # (N, 1)


# --------------------- host-side BN folding + parameter packing ---------------------
def pack_params(params):
    (w1, b1, g1, be1, m1, v1,
     w2, b2, g2, be2, m2, v2,
     w3, b3, g3, be3, m3, v3,
     wg, asrc, adst, bg, g4, be4, m4, v4, wl, bl) = params

    def fold(w, b, g, be, m, v):
        s = g * jax.lax.rsqrt(v + BN_EPS)              # (1, C)
        return w * s, s * (b - m) + be                 # W' = W diag(s), b' = s(b-m)+beta

    w1f, b1f = fold(w1, b1, g1, be1, m1, v1)
    w2f, b2f = fold(w2, b2, g2, be2, m2, v2)
    w3f, b3f = fold(w3, b3, g3, be3, m3, v3)

    s4 = g4 * jax.lax.rsqrt(v4 + BN_EPS)               # (1, 128)
    shift4 = s4 * (bg - m4) + be4                      # GAT bias folded in
    scale4 = s4

    # block-diagonal attention vectors: row h holds a_{src/dst,h} in lanes [h*32, (h+1)*32)
    a_src_blk = jnp.zeros((HEADS, GAT_DIM), jnp.float32)
    a_dst_blk = jnp.zeros((HEADS, GAT_DIM), jnp.float32)
    for hd in range(HEADS):
        lo = hd * GAT_OUT
        a_src_blk = a_src_blk.at[hd, lo:lo + GAT_OUT].set(asrc[hd])
        a_dst_blk = a_dst_blk.at[hd, lo:lo + GAT_OUT].set(adst[hd])

    slab = jnp.zeros((SLAB_ROWS, GAT_DIM), jnp.float32)
    slab = slab.at[_R_W1:_R_W1 + NUM_NODE_FEATURES, 0:C1].set(w1f)
    slab = slab.at[_R_W2:_R_W2 + C1, 0:C2].set(w2f)
    slab = slab.at[_R_W3:_R_W3 + C2, 0:C3].set(w3f)
    slab = slab.at[_R_WG:_R_WG + C3, :].set(wg)
    slab = slab.at[_R_B1, 0:C1].set(b1f[0])
    slab = slab.at[_R_B2, 0:C2].set(b2f[0])
    slab = slab.at[_R_B3, 0:C3].set(b3f[0])
    slab = slab.at[_R_S4, :].set(scale4[0])
    slab = slab.at[_R_SH4, :].set(shift4[0])
    slab = slab.at[_R_WL, :].set(wl[:, 0])
    slab = slab.at[_R_BL, 0].set(bl[0, 0])
    slab = slab.at[_R_ASRC:_R_ASRC + HEADS, :].set(a_src_blk)
    slab = slab.at[_R_ADST:_R_ADST + HEADS, :].set(a_dst_blk)
    return slab


# ----------------------- pure-JAX reference (for verification) -----------------------
def reference_forward(x, ahat, mask, params):
    (w1, b1, g1, be1, m1, v1,
     w2, b2, g2, be2, m2, v2,
     w3, b3, g3, be3, m3, v3,
     wg, asrc, adst, bg, g4, be4, m4, v4, wl, bl) = params

    def bn(h, g, be, m, v):
        return g * (h - m) / jnp.sqrt(v + BN_EPS) + be

    def gcn(h, w, b):
        return ahat @ (h @ w) + b

    h = jax.nn.relu(bn(gcn(x, w1, b1), g1, be1, m1, v1))
    h = jax.nn.relu(bn(gcn(h, w2, b2), g2, be2, m2, v2))
    hr = jax.nn.relu(bn(gcn(h, w3, b3), g3, be3, m3, v3))
    h = h + hr
    outs = []
    for hd in range(HEADS):
        wh = wg[:, hd * GAT_OUT:(hd + 1) * GAT_OUT]
        hh = h @ wh
        a_s = jnp.sum(hh * asrc[hd:hd + 1, :], axis=1, keepdims=True)
        a_d = jnp.sum(hh * adst[hd:hd + 1, :], axis=1, keepdims=True)
        e = a_d + a_s.T
        e = jnp.where(e > 0, e, LEAKY_SLOPE * e)
        e = jnp.where(mask > 0, e, -1e9)
        e = e - jnp.max(e, axis=1, keepdims=True)
        p = jnp.exp(e) * mask
        alpha = p / jnp.sum(p, axis=1, keepdims=True)
        outs.append(alpha @ hh)
    gat = jnp.concatenate(outs, axis=1) + bg
    z = bn(gat, g4, be4, m4, v4)
    z = jnp.where(z > 0, z, jnp.exp(jnp.minimum(z, 0.0)) - 1.0)
    return z @ wl + bl


# ----------------------------- deterministic param init -----------------------------
def init_params(key):
    ks = list(jax.random.split(key, 32))

    def dense(k, shape, scale=0.2):
        return jax.random.normal(k, shape, jnp.float32) * scale

    def bn_params(k, c):
        k1, k2, k3, k4 = jax.random.split(k, 4)
        gamma = jax.random.uniform(k1, (1, c), jnp.float32, 0.5, 1.5)
        beta = jax.random.normal(k2, (1, c), jnp.float32) * 0.1
        mean = jax.random.normal(k3, (1, c), jnp.float32) * 0.1
        var = jax.random.uniform(k4, (1, c), jnp.float32, 0.5, 1.5)
        return gamma, beta, mean, var

    w1 = dense(ks[0], (NUM_NODE_FEATURES, C1)); b1 = dense(ks[1], (1, C1), 0.05)
    g1, be1, m1, v1 = bn_params(ks[2], C1)
    w2 = dense(ks[3], (C1, C2)); b2 = dense(ks[4], (1, C2), 0.05)
    g2, be2, m2, v2 = bn_params(ks[5], C2)
    w3 = dense(ks[6], (C2, C3)); b3 = dense(ks[7], (1, C3), 0.05)
    g3, be3, m3, v3 = bn_params(ks[8], C3)
    wg = dense(ks[9], (C3, GAT_DIM))
    asrc = dense(ks[10], (HEADS, GAT_OUT))
    adst = dense(ks[11], (HEADS, GAT_OUT))
    bg = dense(ks[12], (1, GAT_DIM), 0.05)
    g4, be4, m4, v4 = bn_params(ks[13], GAT_DIM)
    wl = dense(ks[14], (GAT_DIM, 1))
    bl = dense(ks[15], (1, 1), 0.05)

    return (w1, b1, g1, be1, m1, v1,
            w2, b2, g2, be2, m2, v2,
            w3, b3, g3, be3, m3, v3,
            wg, asrc, adst, bg, g4, be4, m4, v4, wl, bl)


def build_graph(n):
    # ring graph, both directions -> edge_index (2, 2n)
    src = jnp.concatenate([jnp.arange(n), (jnp.arange(n) + 1) % n])
    dst = jnp.concatenate([(jnp.arange(n) + 1) % n, jnp.arange(n)])
    edge_index = jnp.stack([src, dst])                        # (2, E): [source; target]

    a = jnp.zeros((n, n), jnp.float32).at[dst, src].set(1.0)  # A[target, source]
    a_tilde = a + jnp.eye(n, dtype=jnp.float32)               # add self loops (GCN)
    deg = jnp.sum(a_tilde, axis=1)
    dinv = 1.0 / jnp.sqrt(deg)
    ahat = dinv[:, None] * a_tilde * dinv[None, :]            # D^-1/2 (A+I) D^-1/2
    mask = jnp.where(a_tilde > 0, 1.0, 0.0).astype(jnp.float32)
    return edge_index, ahat, mask


if __name__ == "__main__":
    key = jax.random.PRNGKey(0)
    kx, kp = jax.random.split(key)

    x = jax.random.normal(kx, (N_NODES, NUM_NODE_FEATURES), jnp.float32)
    edge_index, ahat, mask = build_graph(N_NODES)
    params = init_params(kp)
    slab = jax.block_until_ready(pack_params(params))

    out = jax.block_until_ready(advanced_gcn_forward(x, ahat, mask, slab))
    ref = jax.block_until_ready(reference_forward(x, ahat, mask, params))

    assert out.shape == (N_NODES, 1)
    assert jnp.allclose(out, ref, rtol=1e-3, atol=1e-3), "mismatch vs pure-JAX reference"

    # TODO(synk): Dropout(p=0.01) and batch-statistics BatchNorm are train-mode stochastic/stateful;
    # this kernel implements eval-mode semantics (dropout=identity, BN folded using running stats).
    print("KERNEL_OK")
</pallas_src>

<mosaic_0001>
module attributes {stable_mosaic.version = 11 : i64} {
  func.func @gnn_kernel(%arg0: memref<16x8xf32, #tpu.memory_space<vmem>>, %arg1: memref<16x16xf32, #tpu.memory_space<vmem>>, %arg2: memref<16x16xf32, #tpu.memory_space<vmem>>, %arg3: memref<104x128xf32, #tpu.memory_space<vmem>>, %arg4: memref<1x16xf32, #tpu.memory_space<vmem>>, %arg5: memref<16x128xf32, #tpu.memory_space<vmem>>) attributes {dimension_semantics = [], scalar_prefetch = 0 : i64, scratch_operands = 1 : i64, tpu.core_type = #tpu.core_type<tc>} {
    %c0 = arith.constant 0 : index
    %c0_0 = arith.constant 0 : index
    %0 = vector.load %arg0[%c0, %c0_0] : memref<16x8xf32, #tpu.memory_space<vmem>>, vector<16x8xf32>
    %c0_1 = arith.constant 0 : index
    %c0_2 = arith.constant 0 : index
    %1 = vector.load %arg1[%c0_1, %c0_2] : memref<16x16xf32, #tpu.memory_space<vmem>>, vector<16x16xf32>
    %c0_3 = arith.constant 0 : index
    %c0_4 = arith.constant 0 : index
    %2 = vector.load %arg2[%c0_3, %c0_4] : memref<16x16xf32, #tpu.memory_space<vmem>>, vector<16x16xf32>
    %c0_5 = arith.constant 0 : index
    %c0_6 = arith.constant 0 : index
    %3 = vector.load %arg3[%c0_5, %c0_6] : memref<104x128xf32, #tpu.memory_space<vmem>>, vector<8x16xf32>
    %c8 = arith.constant 8 : index
    %c0_7 = arith.constant 0 : index
    %4 = vector.load %arg3[%c8, %c0_7] : memref<104x128xf32, #tpu.memory_space<vmem>>, vector<16x32xf32>
    %c24 = arith.constant 24 : index
    %c0_8 = arith.constant 0 : index
    %5 = vector.load %arg3[%c24, %c0_8] : memref<104x128xf32, #tpu.memory_space<vmem>>, vector<32x32xf32>
    %c56 = arith.constant 56 : index
    %c0_9 = arith.constant 0 : index
    %6 = vector.load %arg3[%c56, %c0_9] : memref<104x128xf32, #tpu.memory_space<vmem>>, vector<32x128xf32>
    %c88 = arith.constant 88 : index
    %c0_10 = arith.constant 0 : index
    %7 = vector.load %arg3[%c88, %c0_10] : memref<104x128xf32, #tpu.memory_space<vmem>>, vector<1x16xf32>
    %c89 = arith.constant 89 : index
    %c0_11 = arith.constant 0 : index
    %8 = vector.load %arg3[%c89, %c0_11] : memref<104x128xf32, #tpu.memory_space<vmem>>, vector<1x32xf32>
    %c90 = arith.constant 90 : index
    %c0_12 = arith.constant 0 : index
    %9 = vector.load %arg3[%c90, %c0_12] : memref<104x128xf32, #tpu.memory_space<vmem>>, vector<1x32xf32>
    %c91 = arith.constant 91 : index
    %c0_13 = arith.constant 0 : index
    %10 = vector.load %arg3[%c91, %c0_13] : memref<104x128xf32, #tpu.memory_space<vmem>>, vector<1x128xf32>
    %c92 = arith.constant 92 : index
    %c0_14 = arith.constant 0 : index
    %11 = vector.load %arg3[%c92, %c0_14] : memref<104x128xf32, #tpu.memory_space<vmem>>, vector<1x128xf32>
    %c93 = arith.constant 93 : index
    %c0_15 = arith.constant 0 : index
    %12 = vector.load %arg3[%c93, %c0_15] : memref<104x128xf32, #tpu.memory_space<vmem>>, vector<1x128xf32>
    %c94 = arith.constant 94 : index
    %c0_16 = arith.constant 0 : index
    %13 = vector.load %arg3[%c94, %c0_16] : memref<104x128xf32, #tpu.memory_space<vmem>>, vector<1x1xf32>
    %c96 = arith.constant 96 : index
    %c0_17 = arith.constant 0 : index
    %14 = vector.load %arg3[%c96, %c0_17] : memref<104x128xf32, #tpu.memory_space<vmem>>, vector<4x128xf32>
    %c100 = arith.constant 100 : index
    %c0_18 = arith.constant 0 : index
    %15 = vector.load %arg3[%c100, %c0_18] : memref<104x128xf32, #tpu.memory_space<vmem>>, vector<4x128xf32>
    %cst = arith.constant dense<0.000000e+00> : vector<16x16xf32>
    %16 = tpu.matmul %0, %3, %cst {dimension_numbers = #tpu.dot_dimension_numbers<[1], [0], [0], [1], [0, 0, 1, 1], [], []>} : vector<16x8xf32>, vector<8x16xf32>, vector<16x16xf32> -> vector<16x16xf32>
    %cst_19 = arith.constant dense<0.000000e+00> : vector<16x16xf32>
    %17 = tpu.matmul %1, %16, %cst_19 {dimension_numbers = #tpu.dot_dimension_numbers<[1], [0], [0], [1], [0, 0, 1, 1], [], []>} : vector<16x16xf32>, vector<16x16xf32>, vector<16x16xf32> -> vector<16x16xf32>
    %18 = vector.broadcast %7 : vector<1x16xf32> to vector<16x16xf32>
    %19 = arith.addf %17, %18 : vector<16x16xf32>
    %cst_20 = arith.constant 0.000000e+00 : f32
    %20 = vector.broadcast %cst_20 : f32 to vector<16x16xf32>
    %21 = arith.maximumf %19, %20 : vector<16x16xf32>
    %cst_21 = arith.constant dense<0.000000e+00> : vector<16x32xf32>
    %22 = tpu.matmul %21, %4, %cst_21 {dimension_numbers = #tpu.dot_dimension_numbers<[1], [0], [0], [1], [0, 0, 1, 1], [], []>} : vector<16x16xf32>, vector<16x32xf32>, vector<16x32xf32> -> vector<16x32xf32>
    %cst_22 = arith.constant dense<0.000000e+00> : vector<16x32xf32>
    %23 = tpu.matmul %1, %22, %cst_22 {dimension_numbers = #tpu.dot_dimension_numbers<[1], [0], [0], [1], [0, 0, 1, 1], [], []>} : vector<16x16xf32>, vector<16x32xf32>, vector<16x32xf32> -> vector<16x32xf32>
    %24 = vector.broadcast %8 : vector<1x32xf32> to vector<16x32xf32>
    %25 = arith.addf %23, %24 : vector<16x32xf32>
    %cst_23 = arith.constant 0.000000e+00 : f32
    %26 = vector.broadcast %cst_23 : f32 to vector<16x32xf32>
    %27 = arith.maximumf %25, %26 : vector<16x32xf32>
    %cst_24 = arith.constant dense<0.000000e+00> : vector<16x32xf32>
    %28 = tpu.matmul %27, %5, %cst_24 {dimension_numbers = #tpu.dot_dimension_numbers<[1], [0], [0], [1], [0, 0, 1, 1], [], []>} : vector<16x32xf32>, vector<32x32xf32>, vector<16x32xf32> -> vector<16x32xf32>
    %cst_25 = arith.constant dense<0.000000e+00> : vector<16x32xf32>
    %29 = tpu.matmul %1, %28, %cst_25 {dimension_numbers = #tpu.dot_dimension_numbers<[1], [0], [0], [1], [0, 0, 1, 1], [], []>} : vector<16x16xf32>, vector<16x32xf32>, vector<16x32xf32> -> vector<16x32xf32>
    %30 = vector.broadcast %9 : vector<1x32xf32> to vector<16x32xf32>
    %31 = arith.addf %29, %30 : vector<16x32xf32>
    %cst_26 = arith.constant 0.000000e+00 : f32
    %32 = vector.broadcast %cst_26 : f32 to vector<16x32xf32>
    %33 = arith.maximumf %31, %32 : vector<16x32xf32>
    %34 = arith.addf %27, %33 : vector<16x32xf32>
    %cst_27 = arith.constant dense<0.000000e+00> : vector<16x128xf32>
    %35 = tpu.matmul %34, %6, %cst_27 {dimension_numbers = #tpu.dot_dimension_numbers<[1], [0], [0], [1], [0, 0, 1, 1], [], []>} : vector<16x32xf32>, vector<32x128xf32>, vector<16x128xf32> -> vector<16x128xf32>
    %cst_28 = arith.constant dense<0.000000e+00> : vector<4x16xf32>
    %36 = tpu.matmul %14, %35, %cst_28 {dimension_numbers = #tpu.dot_dimension_numbers<[1], [1], [0], [0], [0, 0, 1, 0], [], []>} : vector<4x128xf32>, vector<16x128xf32>, vector<4x16xf32> -> vector<4x16xf32>
    %cst_29 = arith.constant dense<0.000000e+00> : vector<16x4xf32>
    %37 = tpu.matmul %35, %15, %cst_29 {dimension_numbers = #tpu.dot_dimension_numbers<[1], [1], [0], [0], [0, 0, 1, 0], [], []>} : vector<16x128xf32>, vector<4x128xf32>, vector<16x4xf32> -> vector<16x4xf32>
    %38 = vector.extract_strided_slice %37 {offsets = [0, 0], sizes = [16, 1], strides = [1, 1]} : vector<16x4xf32> to vector<16x1xf32>
    %39 = vector.extract_strided_slice %36 {offsets = [0, 0], sizes = [1, 16], strides = [1, 1]} : vector<4x16xf32> to vector<1x16xf32>
    %40 = vector.broadcast %38 : vector<16x1xf32> to vector<16x16xf32>
    %41 = vector.broadcast %39 : vector<1x16xf32> to vector<16x16xf32>
    %42 = arith.addf %40, %41 : vector<16x16xf32>
    %cst_30 = arith.constant 0.000000e+00 : f32
    %43 = vector.broadcast %cst_30 : f32 to vector<16x16xf32>
    %44 = arith.cmpf ogt, %42, %43 : vector<16x16xf32>
    %cst_31 = arith.constant 2.000000e-01 : f32
    %45 = vector.broadcast %cst_31 : f32 to vector<16x16xf32>
    %46 = arith.mulf %45, %42 : vector<16x16xf32>
    %47 = arith.select %44, %42, %46 : vector<16x16xi1>, vector<16x16xf32>
    %cst_32 = arith.constant 0.000000e+00 : f32
    %48 = vector.broadcast %cst_32 : f32 to vector<16x16xf32>
    %49 = arith.cmpf ogt, %2, %48 : vector<16x16xf32>
    %cst_33 = arith.constant -1.000000e+09 : f32
    %50 = vector.broadcast %cst_33 : f32 to vector<16x16xf32>
    %51 = arith.select %49, %47, %50 : vector<16x16xi1>, vector<16x16xf32>
    %cst_34 = arith.constant dense<0xFF800000> : vector<16xf32>
    %52 = vector.multi_reduction <maximumf>, %51, %cst_34 [1] : vector<16x16xf32> to vector<16xf32>
    %53 = vector.shape_cast %52 : vector<16xf32> to vector<16x1xf32>
    %54 = vector.broadcast %53 : vector<16x1xf32> to vector<16x16xf32>
    %55 = arith.subf %51, %54 : vector<16x16xf32>
    %56 = math.exp %55 : vector<16x16xf32>
    %cst_35 = arith.constant dense<0.000000e+00> : vector<16xf32>
    %57 = vector.multi_reduction <add>, %56, %cst_35 [1] : vector<16x16xf32> to vector<16xf32>
    %58 = vector.shape_cast %57 : vector<16xf32> to vector<16x1xf32>
    %cst_36 = arith.constant 1.000000e+00 : f32
    %59 = vector.broadcast %cst_36 : f32 to vector<16x1xf32>
    %60 = arith.divf %59, %58 : vector<16x1xf32>
    %61 = vector.broadcast %60 : vector<16x1xf32> to vector<16x16xf32>
    %62 = arith.mulf %56, %61 : vector<16x16xf32>
    %63 = vector.extract_strided_slice %35 {offsets = [0, 0], sizes = [16, 32], strides = [1, 1]} : vector<16x128xf32> to vector<16x32xf32>
    %cst_37 = arith.constant dense<0.000000e+00> : vector<16x32xf32>
    %64 = tpu.matmul %62, %63, %cst_37 {dimension_numbers = #tpu.dot_dimension_numbers<[1], [0], [0], [1], [0, 0, 1, 1], [], []>} : vector<16x16xf32>, vector<16x32xf32>, vector<16x32xf32> -> vector<16x32xf32>
    %c0_38 = arith.constant 0 : index
    %c0_39 = arith.constant 0 : index
    %65 = vector.load %arg5[%c0_38, %c0_39] : memref<16x128xf32, #tpu.memory_space<vmem>>, vector<16x32xf32>
    tpu.vector_store %arg5[%c0_38, %c0_39], %64 {strides = array<i32>} : memref<16x128xf32, #tpu.memory_space<vmem>>, vector<16x32xf32>,
    %66 = vector.extract_strided_slice %37 {offsets = [0, 1], sizes = [16, 1], strides = [1, 1]} : vector<16x4xf32> to vector<16x1xf32>
    %67 = vector.extract_strided_slice %36 {offsets = [1, 0], sizes = [1, 16], strides = [1, 1]} : vector<4x16xf32> to vector<1x16xf32>
    %68 = vector.broadcast %66 : vector<16x1xf32> to vector<16x16xf32>
    %69 = vector.broadcast %67 : vector<1x16xf32> to vector<16x16xf32>
    %70 = arith.addf %68, %69 : vector<16x16xf32>
    %cst_40 = arith.constant 0.000000e+00 : f32
    %71 = vector.broadcast %cst_40 : f32 to vector<16x16xf32>
    %72 = arith.cmpf ogt, %70, %71 : vector<16x16xf32>
    %cst_41 = arith.constant 2.000000e-01 : f32
    %73 = vector.broadcast %cst_41 : f32 to vector<16x16xf32>
    %74 = arith.mulf %73, %70 : vector<16x16xf32>
    %75 = arith.select %72, %70, %74 : vector<16x16xi1>, vector<16x16xf32>
    %cst_42 = arith.constant 0.000000e+00 : f32
    %76 = vector.broadcast %cst_42 : f32 to vector<16x16xf32>
    %77 = arith.cmpf ogt, %2, %76 : vector<16x16xf32>
    %cst_43 = arith.constant -1.000000e+09 : f32
    %78 = vector.broadcast %cst_43 : f32 to vector<16x16xf32>
    %79 = arith.select %77, %75, %78 : vector<16x16xi1>, vector<16x16xf32>
    %cst_44 = arith.constant dense<0xFF800000> : vector<16xf32>
    %80 = vector.multi_reduction <maximumf>, %79, %cst_44 [1] : vector<16x16xf32> to vector<16xf32>
    %81 = vector.shape_cast %80 : vector<16xf32> to vector<16x1xf32>
    %82 = vector.broadcast %81 : vector<16x1xf32> to vector<16x16xf32>
    %83 = arith.subf %79, %82 : vector<16x16xf32>
    %84 = math.exp %83 : vector<16x16xf32>
    %cst_45 = arith.constant dense<0.000000e+00> : vector<16xf32>
    %85 = vector.multi_reduction <add>, %84, %cst_45 [1] : vector<16x16xf32> to vector<16xf32>
    %86 = vector.shape_cast %85 : vector<16xf32> to vector<16x1xf32>
    %cst_46 = arith.constant 1.000000e+00 : f32
    %87 = vector.broadcast %cst_46 : f32 to vector<16x1xf32>
    %88 = arith.divf %87, %86 : vector<16x1xf32>
    %89 = vector.broadcast %88 : vector<16x1xf32> to vector<16x16xf32>
    %90 = arith.mulf %84, %89 : vector<16x16xf32>
    %91 = vector.extract_strided_slice %35 {offsets = [0, 32], sizes = [16, 32], strides = [1, 1]} : vector<16x128xf32> to vector<16x32xf32>
    %cst_47 = arith.constant dense<0.000000e+00> : vector<16x32xf32>
    %92 = tpu.matmul %90, %91, %cst_47 {dimension_numbers = #tpu.dot_dimension_numbers<[1], [0], [0], [1], [0, 0, 1, 1], [], []>} : vector<16x16xf32>, vector<16x32xf32>, vector<16x32xf32> -> vector<16x32xf32>
    %c0_48 = arith.constant 0 : index
    %c32 = arith.constant 32 : index
    %93 = vector.load %arg5[%c0_48, %c32] : memref<16x128xf32, #tpu.memory_space<vmem>>, vector<16x32xf32>
    tpu.vector_store %arg5[%c0_48, %c32], %92 {strides = array<i32>} : memref<16x128xf32, #tpu.memory_space<vmem>>, vector<16x32xf32>,
    %94 = vector.extract_strided_slice %37 {offsets = [0, 2], sizes = [16, 1], strides = [1, 1]} : vector<16x4xf32> to vector<16x1xf32>
    %95 = vector.extract_strided_slice %36 {offsets = [2, 0], sizes = [1, 16], strides = [1, 1]} : vector<4x16xf32> to vector<1x16xf32>
    %96 = vector.broadcast %94 : vector<16x1xf32> to vector<16x16xf32>
    %97 = vector.broadcast %95 : vector<1x16xf32> to vector<16x16xf32>
    %98 = arith.addf %96, %97 : vector<16x16xf32>
    %cst_49 = arith.constant 0.000000e+00 : f32
    %99 = vector.broadcast %cst_49 : f32 to vector<16x16xf32>
    %100 = arith.cmpf ogt, %98, %99 : vector<16x16xf32>
    %cst_50 = arith.constant 2.000000e-01 : f32
    %101 = vector.broadcast %cst_50 : f32 to vector<16x16xf32>
    %102 = arith.mulf %101, %98 : vector<16x16xf32>
    %103 = arith.select %100, %98, %102 : vector<16x16xi1>, vector<16x16xf32>
    %cst_51 = arith.constant 0.000000e+00 : f32
    %104 = vector.broadcast %cst_51 : f32 to vector<16x16xf32>
    %105 = arith.cmpf ogt, %2, %104 : vector<16x16xf32>
    %cst_52 = arith.constant -1.000000e+09 : f32
    %106 = vector.broadcast %cst_52 : f32 to vector<16x16xf32>
    %107 = arith.select %105, %103, %106 : vector<16x16xi1>, vector<16x16xf32>
    %cst_53 = arith.constant dense<0xFF800000> : vector<16xf32>
    %108 = vector.multi_reduction <maximumf>, %107, %cst_53 [1] : vector<16x16xf32> to vector<16xf32>
    %109 = vector.shape_cast %108 : vector<16xf32> to vector<16x1xf32>
    %110 = vector.broadcast %109 : vector<16x1xf32> to vector<16x16xf32>
    %111 = arith.subf %107, %110 : vector<16x16xf32>
    %112 = math.exp %111 : vector<16x16xf32>
    %cst_54 = arith.constant dense<0.000000e+00> : vector<16xf32>
    %113 = vector.multi_reduction <add>, %112, %cst_54 [1] : vector<16x16xf32> to vector<16xf32>
    %114 = vector.shape_cast %113 : vector<16xf32> to vector<16x1xf32>
    %cst_55 = arith.constant 1.000000e+00 : f32
    %115 = vector.broadcast %cst_55 : f32 to vector<16x1xf32>
    %116 = arith.divf %115, %114 : vector<16x1xf32>
    %117 = vector.broadcast %116 : vector<16x1xf32> to vector<16x16xf32>
    %118 = arith.mulf %112, %117 : vector<16x16xf32>
    %119 = vector.extract_strided_slice %35 {offsets = [0, 64], sizes = [16, 32], strides = [1, 1]} : vector<16x128xf32> to vector<16x32xf32>
    %cst_56 = arith.constant dense<0.000000e+00> : vector<16x32xf32>
    %120 = tpu.matmul %118, %119, %cst_56 {dimension_numbers = #tpu.dot_dimension_numbers<[1], [0], [0], [1], [0, 0, 1, 1], [], []>} : vector<16x16xf32>, vector<16x32xf32>, vector<16x32xf32> -> vector<16x32xf32>
    %c0_57 = arith.constant 0 : index
    %c64 = arith.constant 64 : index
    %121 = vector.load %arg5[%c0_57, %c64] : memref<16x128xf32, #tpu.memory_space<vmem>>, vector<16x32xf32>
    tpu.vector_store %arg5[%c0_57, %c64], %120 {strides = array<i32>} : memref<16x128xf32, #tpu.memory_space<vmem>>, vector<16x32xf32>,
    %122 = vector.extract_strided_slice %37 {offsets = [0, 3], sizes = [16, 1], strides = [1, 1]} : vector<16x4xf32> to vector<16x1xf32>
    %123 = vector.extract_strided_slice %36 {offsets = [3, 0], sizes = [1, 16], strides = [1, 1]} : vector<4x16xf32> to vector<1x16xf32>
    %124 = vector.broadcast %122 : vector<16x1xf32> to vector<16x16xf32>
    %125 = vector.broadcast %123 : vector<1x16xf32> to vector<16x16xf32>
    %126 = arith.addf %124, %125 : vector<16x16xf32>
    %cst_58 = arith.constant 0.000000e+00 : f32
    %127 = vector.broadcast %cst_58 : f32 to vector<16x16xf32>
    %128 = arith.cmpf ogt, %126, %127 : vector<16x16xf32>
    %cst_59 = arith.constant 2.000000e-01 : f32
    %129 = vector.broadcast %cst_59 : f32 to vector<16x16xf32>
    %130 = arith.mulf %129, %126 : vector<16x16xf32>
    %131 = arith.select %128, %126, %130 : vector<16x16xi1>, vector<16x16xf32>
    %cst_60 = arith.constant 0.000000e+00 : f32
    %132 = vector.broadcast %cst_60 : f32 to vector<16x16xf32>
    %133 = arith.cmpf ogt, %2, %132 : vector<16x16xf32>
    %cst_61 = arith.constant -1.000000e+09 : f32
    %134 = vector.broadcast %cst_61 : f32 to vector<16x16xf32>
    %135 = arith.select %133, %131, %134 : vector<16x16xi1>, vector<16x16xf32>
    %cst_62 = arith.constant dense<0xFF800000> : vector<16xf32>
    %136 = vector.multi_reduction <maximumf>, %135, %cst_62 [1] : vector<16x16xf32> to vector<16xf32>
    %137 = vector.shape_cast %136 : vector<16xf32> to vector<16x1xf32>
    %138 = vector.broadcast %137 : vector<16x1xf32> to vector<16x16xf32>
    %139 = arith.subf %135, %138 : vector<16x16xf32>
    %140 = math.exp %139 : vector<16x16xf32>
    %cst_63 = arith.constant dense<0.000000e+00> : vector<16xf32>
    %141 = vector.multi_reduction <add>, %140, %cst_63 [1] : vector<16x16xf32> to vector<16xf32>
    %142 = vector.shape_cast %141 : vector<16xf32> to vector<16x1xf32>
    %cst_64 = arith.constant 1.000000e+00 : f32
    %143 = vector.broadcast %cst_64 : f32 to vector<16x1xf32>
    %144 = arith.divf %143, %142 : vector<16x1xf32>
    %145 = vector.broadcast %144 : vector<16x1xf32> to vector<16x16xf32>
    %146 = arith.mulf %140, %145 : vector<16x16xf32>
    %147 = vector.extract_strided_slice %35 {offsets = [0, 96], sizes = [16, 32], strides = [1, 1]} : vector<16x128xf32> to vector<16x32xf32>
    %cst_65 = arith.constant dense<0.000000e+00> : vector<16x32xf32>
    %148 = tpu.matmul %146, %147, %cst_65 {dimension_numbers = #tpu.dot_dimension_numbers<[1], [0], [0], [1], [0, 0, 1, 1], [], []>} : vector<16x16xf32>, vector<16x32xf32>, vector<16x32xf32> -> vector<16x32xf32>
    %c0_66 = arith.constant 0 : index
    %c96_67 = arith.constant 96 : index
    %149 = vector.load %arg5[%c0_66, %c96_67] : memref<16x128xf32, #tpu.memory_space<vmem>>, vector<16x32xf32>
    tpu.vector_store %arg5[%c0_66, %c96_67], %148 {strides = array<i32>} : memref<16x128xf32, #tpu.memory_space<vmem>>, vector<16x32xf32>,
    %c0_68 = arith.constant 0 : index
    %c0_69 = arith.constant 0 : index
    %150 = vector.load %arg5[%c0_68, %c0_69] : memref<16x128xf32, #tpu.memory_space<vmem>>, vector<16x128xf32>
    %151 = vector.broadcast %10 : vector<1x128xf32> to vector<16x128xf32>
    %152 = arith.mulf %150, %151 : vector<16x128xf32>
    %153 = vector.broadcast %11 : vector<1x128xf32> to vector<16x128xf32>
    %154 = arith.addf %152, %153 : vector<16x128xf32>
    %cst_70 = arith.constant 0.000000e+00 : f32
    %155 = vector.broadcast %cst_70 : f32 to vector<16x128xf32>
    %156 = arith.cmpf ogt, %154, %155 : vector<16x128xf32>
    %cst_71 = arith.constant 0.000000e+00 : f32
    %157 = vector.broadcast %cst_71 : f32 to vector<16x128xf32>
    %158 = arith.minimumf %154, %157 : vector<16x128xf32>
    %159 = math.exp %158 : vector<16x128xf32>
    %cst_72 = arith.constant 1.000000e+00 : f32
    %160 = vector.broadcast %cst_72 : f32 to vector<16x128xf32>
    %161 = arith.subf %159, %160 : vector<16x128xf32>
    %162 = arith.select %156, %154, %161 : vector<16x128xi1>, vector<16x128xf32>
    %cst_73 = arith.constant dense<0.000000e+00> : vector<1x16xf32>
    %163 = tpu.matmul %12, %162, %cst_73 {dimension_numbers = #tpu.dot_dimension_numbers<[1], [1], [0], [0], [0, 0, 1, 0], [], []>} : vector<1x128xf32>, vector<16x128xf32>, vector<1x16xf32> -> vector<1x16xf32>
    %164 = vector.broadcast %13 : vector<1x1xf32> to vector<1x16xf32>
    %165 = arith.addf %163, %164 : vector<1x16xf32>
    %c0_74 = arith.constant 0 : index
    %c0_75 = arith.constant 0 : index
    %166 = vector.load %arg4[%c0_74, %c0_75] : memref<1x16xf32, #tpu.memory_space<vmem>>, vector<1x16xf32>
    tpu.vector_store %arg4[%c0_74, %c0_75], %165 {strides = array<i32>} : memref<1x16xf32, #tpu.memory_space<vmem>>, vector<1x16xf32>,
    return
  }
}

</mosaic_0001>

<llo_original>
// kernel: tpu_custom_call.1
$region0: #{tpu_custom_call.1}
  #allocation0 [shape = 'u32[]', space=smem, size = 0x4, offset = 0x4, fixed_abs, tag = 'smem constant byte address 0x4 - core index']
  #allocation1 [shape = 'u32[72,128]{1,0:T(1,128)}', space=vmem, size = 0x9000, scoped, tag = 'internal scratch']
  #allocation2 [shape = 'f32[16,128]{1,0:T(8,128)}', space=vmem, size = 0x2000, scoped, tag = 'scratch operand']
  %s0 = inlined_call_operand.vmem [shape: f32[16,8], index: 0, kind: input, shape index: {}]
  %s1 = inlined_call_operand.vmem [shape: f32[16,16], index: 1, kind: input, shape index: {}]
  %s2 = inlined_call_operand.hbm [shape: f32[16,16], index: 2, kind: input, shape index: {}]
  %s3 = inlined_call_operand.hbm [shape: f32[104,128], index: 3, kind: input, shape index: {}]
  %s4 = inlined_call_operand.hbm [shape: f32[1,16], index: 4, kind: output, shape index: {}]
  %s5 = sld [smem:[#allocation0]]
  $region34: #{tpu_custom_call.1} parent=0
    _
  %s7 = ssub.s32 1, %s5
  %s8 = scalar_select 0, %s7, %s5
  $region1: #{tpu_custom_call.1} parent=0
    #allocation3 [shape = 'u8[8192]{0}', space=vmem, size = 0x2000, scoped, tag = 'input window, operand 2, single buffered']
    #allocation4 [shape = 's32[1]{0}', space=sflag, size = 0x4, scoped, tag = 'scoped memory for tpu_custom_call.1']
    #allocation5 [shape = 's32[1]{0}', space=sflag, size = 0x4, scoped, tag = 'scoped memory for tpu_custom_call.1']
    #allocation6 [shape = 'u8[53248]{0}', space=vmem, size = 0xd000, scoped, tag = 'input window, operand 3, single buffered']
    #allocation7 [shape = 's32[1]{0}', space=sflag, size = 0x4, scoped, tag = 'scoped memory for tpu_custom_call.1']
    #allocation8 [shape = 'u8[512]{0}', space=vmem, size = 0x400, scoped, tag = 'output window, operand 0, single buffered']
    %9 = vsyncpa [#allocation4], 0
    %10 = vsyncpa [#allocation7], 0
    %11 = vsyncpa [#allocation5], 0
    // Predicated region
    $region2: #{tpu_custom_call.1} parent=1 // pred_check
      _
    $region3: #{tpu_custom_call.1} parent=1 // pred_check_branch
      %13 = sbr.rel (0) target = $region5
    $region4: #{tpu_custom_call.1} parent=1 // pred_region
      _
    $region5: #{tpu_custom_call.1} parent=1 // pred_fallthru
      _
    // Predicated region
    $region6: #{tpu_custom_call.1} parent=1 // pred_check
      _
    $region7: #{tpu_custom_call.1} parent=1 // pred_check_branch
      %15 = sbr.rel (0) target = $region9
    $region8: #{tpu_custom_call.1} parent=1 // pred_region
      _
    $region9: #{tpu_custom_call.1} parent=1 // pred_fallthru
      _
    // Predicated region
    $region10: #{tpu_custom_call.1} parent=1 // pred_check
      _
    $region11: #{tpu_custom_call.1} parent=1 // pred_check_branch
      %17 = sbr.rel (0) target = $region13
    $region12: #{tpu_custom_call.1} parent=1 // pred_region
      %19 = vsyncadd [#allocation4], 0
      %s20 = sshll.u32 %s2, 4
      %s21 = int_to_ptr.hbm [resolvable:$true] %s20
      %s22 = sshll.u32 [#allocation3], 4
      %s23 = int_to_ptr.vmem [resolvable:$true] %s22
      %28 = dma.hbm_to_vmem [thread:$0]  %s21, 256, %s23, [#allocation4], 128, 128, 8
    $region13: #{tpu_custom_call.1} parent=1 // pred_fallthru
      _
    // Predicated region
    $region14: #{tpu_custom_call.1} parent=1 // pred_check
      _
    $region15: #{tpu_custom_call.1} parent=1 // pred_check_branch
      %30 = sbr.rel (0) target = $region17
    $region16: #{tpu_custom_call.1} parent=1 // pred_region
      %32 = vsyncadd [#allocation7], 0
      %s33 = sshll.u32 %s3, 4
      %s34 = int_to_ptr.hbm [resolvable:$true] %s33
      %s35 = sshll.u32 [#allocation6], 4
      %s36 = int_to_ptr.vmem [resolvable:$true] %s35
      %41 = dma.hbm_to_vmem [thread:$0]  %s34, 1664, %s36, [#allocation7], 128, 128, 8
    $region17: #{tpu_custom_call.1} parent=1 // pred_fallthru
      _
    // Predicated region
    $region18: #{tpu_custom_call.1} parent=1 // pred_check
      _
    $region19: #{tpu_custom_call.1} parent=1 // pred_check_branch
      %43 = sbr.rel (0) target = $region21
    $region20: #{tpu_custom_call.1} parent=1 // pred_region
      %45 = dma.done [#allocation4], 256
    $region21: #{tpu_custom_call.1} parent=1 // pred_fallthru
      _
    // Predicated region
    $region22: #{tpu_custom_call.1} parent=1 // pred_check
      _
    $region23: #{tpu_custom_call.1} parent=1 // pred_check_branch
      %47 = sbr.rel (0) target = $region25
    $region24: #{tpu_custom_call.1} parent=1 // pred_region
      %49 = dma.done [#allocation7], 1664
    $region25: #{tpu_custom_call.1} parent=1 // pred_fallthru
      _
    %v50 = vld [vmem:[%s0] sm:$0xff]
    %v51 = vld [vmem:[%s0 + $0x8] sm:$0xff]
    %v52 = vld [vmem:[%s1] sm:$0xff]
    %v53 = vld [vmem:[%s1 + $0x8] sm:$0xff]
    %v54 = vld [vmem:[#allocation3] sm:$0xff]
    %v55 = vld [vmem:[#allocation3 + $0x8] sm:$0xff]
    %v56 = vld [vmem:[#allocation6] sm:$0xff]
    %v57 = vld [vmem:[#allocation6 + $0x8] sm:$0xff]
    %v58 = vld [vmem:[#allocation6 + $0x10] sm:$0xff]
    %v59 = vld [vmem:[#allocation6 + $0x18] sm:$0xff]
    %v60 = vld [vmem:[#allocation6 + $0x20] sm:$0xff]
    %v61 = vld [vmem:[#allocation6 + $0x28] sm:$0xff]
    %v62 = vld [vmem:[#allocation6 + $0x30] sm:$0xff]
    %v63 = vld [vmem:[#allocation6 + $0x38] sm:$0xff]
    %v64 = vld [vmem:[#allocation6 + $0x40] sm:$0xff]
    %v65 = vld [vmem:[#allocation6 + $0x48] sm:$0xff]
    %v66 = vld [vmem:[#allocation6 + $0x50] sm:$0xff]
    %v67 = vld [vmem:[#allocation6 + $0x58] sm:$0x1]
    %v68 = vld [vmem:[#allocation6 + $0x59] sm:$0x1]
    %v69 = vld [vmem:[#allocation6 + $0x5a] sm:$0x1]
    %v70 = vld [vmem:[#allocation6 + $0x5b] sm:$0x1]
    %v71 = vld [vmem:[#allocation6 + $0x5c] sm:$0x1]
    %v72 = vld [vmem:[#allocation6 + $0x5d] sm:$0x1]
    %v73 = vld [vmem:[#allocation6 + $0x5e] sm:$0x1]
    %v74 = vld [vmem:[#allocation6 + $0x60] sm:$0xf]
    %v75 = vld [vmem:[#allocation6 + $0x64] sm:$0xf]
    %vm76 = vcmask 64512
    %v78 = vsel %vm76, %v50, 0
    %v81 = vsel %vm76, %v51, 0
    %83 = vmatpush.msra.mxu0 0.0
    %84 = vmatpush.msra.mxu0 0.0
    %85 = vmatpush.msra.mxu0 0.0
    %86 = vmatpush.msra.mxu0 0.0
    %87 = vmatpush.msra.mxu0 0.0
    %88 = vmatpush.msra.mxu0 0.0
    %89 = vmatpush.msra.mxu0 0.0
    %90 = vmatpush.msra.mxu0 0.0
    %91 = vmatpush.msra.mxu0 0.0
    %92 = vmatpush.msra.mxu0 0.0
    %93 = vmatpush.msra.mxu0 0.0
    %94 = vmatpush.msra.mxu0 0.0
    %95 = vmatpush.msra.mxu0 0.0
    %96 = vmatpush.msra.mxu0 0.0
    %97 = vmatpush.msra.mxu0 0.0
    %98 = vmatpush.msra.mxu0 %v56
    %99 = vmatmul.f32.gmra.mxu0 %v78
    %v100 = vpop.f32.mrf.mxu0
    %v101 = vadd.f32 0.0, %v100
    %102 = vmatmul.f32.gmra.mxu0 %v81
    %v103 = vpop.f32.mrf.mxu0
    %v104 = vadd.f32 0.0, %v103
    %105 = vdwg.mxu0
    %v106 = vperm.slane %v67, 0
    %vm107 = vcmask 130048
    %v109 = vsel %vm107, %v52, 0
    %v112 = vsel %vm107, %v53, 0
    %114 = vmatpush.msra.mxu0 0.0
    %115 = vmatpush.msra.mxu0 0.0
    %116 = vmatpush.msra.mxu0 0.0
    %117 = vmatpush.msra.mxu0 0.0
    %118 = vmatpush.msra.mxu0 0.0
    %119 = vmatpush.msra.mxu0 0.0
    %120 = vmatpush.msra.mxu0 0.0
    %121 = vmatpush.msra.mxu0 0.0
    %122 = vmatpush.msra.mxu0 0.0
    %123 = vmatpush.msra.mxu0 0.0
    %124 = vmatpush.msra.mxu0 0.0
    %125 = vmatpush.msra.mxu0 0.0
    %126 = vmatpush.msra.mxu0 0.0
    %127 = vmatpush.msra.mxu0 0.0
    %128 = vmatpush.msra.mxu0 %v104
    %129 = vmatpush.msra.mxu0 %v101
    %130 = vmatmul.f32.gmra.mxu0 %v109
    %v131 = vpop.f32.mrf.mxu0
    %v132 = vadd.f32 %v106, %v131
    %133 = vmatmul.f32.gmra.mxu0 %v112
    %v134 = vpop.f32.mrf.mxu0
    %v135 = vadd.f32 %v106, %v134
    %136 = vdwg.mxu0
    %v137 = vmax.f32 %v132, 0.0
    %v138 = vmax.f32 %v135, 0.0
    %v140 = vsel %vm107, %v137, 0
    %v143 = vsel %vm107, %v138, 0
    %145 = vmatpush.msra.mxu0 0.0
    %146 = vmatpush.msra.mxu0 0.0
    %147 = vmatpush.msra.mxu0 0.0
    %148 = vmatpush.msra.mxu0 0.0
    %149 = vmatpush.msra.mxu0 0.0
    %150 = vmatpush.msra.mxu0 0.0
    %151 = vmatpush.msra.mxu0 0.0
    %152 = vmatpush.msra.mxu0 0.0
    %153 = vmatpush.msra.mxu0 0.0
    %154 = vmatpush.msra.mxu0 0.0
    %155 = vmatpush.msra.mxu0 0.0
    %156 = vmatpush.msra.mxu0 0.0
    %157 = vmatpush.msra.mxu0 0.0
    %158 = vmatpush.msra.mxu0 0.0
    %159 = vmatpush.msra.mxu0 %v58
    %160 = vmatpush.msra.mxu0 %v57
    %161 = vmatmul.f32.gmra.mxu0 %v140
    %v162 = vpop.f32.mrf.mxu0
    %v163 = vadd.f32 0.0, %v162
    %164 = vmatmul.f32.gmra.mxu0 %v143
    %v165 = vpop.f32.mrf.mxu0
    %v166 = vadd.f32 0.0, %v165
    %167 = vdwg.mxu0
    %v168 = vperm.slane %v68, 0
    %169 = vmatpush.msra.mxu0 0.0
    %170 = vmatpush.msra.mxu0 0.0
    %171 = vmatpush.msra.mxu0 0.0
    %172 = vmatpush.msra.mxu0 0.0
    %173 = vmatpush.msra.mxu0 0.0
    %174 = vmatpush.msra.mxu0 0.0
    %175 = vmatpush.msra.mxu0 0.0
    %176 = vmatpush.msra.mxu0 0.0
    %177 = vmatpush.msra.mxu0 0.0
    %178 = vmatpush.msra.mxu0 0.0
    %179 = vmatpush.msra.mxu0 0.0
    %180 = vmatpush.msra.mxu0 0.0
    %181 = vmatpush.msra.mxu0 0.0
    %182 = vmatpush.msra.mxu0 0.0
    %183 = vmatpush.msra.mxu0 %v166
    %184 = vmatpush.msra.mxu0 %v163
    %185 = vmatmul.f32.gmra.mxu0 %v109
    %v186 = vpop.f32.mrf.mxu0
    %v187 = vadd.f32 %v168, %v186
    %188 = vmatmul.f32.gmra.mxu0 %v112
    %v189 = vpop.f32.mrf.mxu0
    %v190 = vadd.f32 %v168, %v189
    %191 = vdwg.mxu0
    %v192 = vmax.f32 %v187, 0.0
    %v193 = vmax.f32 %v190, 0.0
    %vm194 = vcmask 261120
    %v196 = vsel %vm194, %v192, 0
    %v199 = vsel %vm194, %v193, 0
    %201 = vmatpush.msra.mxu0 0.0
    %202 = vmatpush.msra.mxu0 0.0
    %203 = vmatpush.msra.mxu0 0.0
    %204 = vmatpush.msra.mxu0 0.0
    %205 = vmatpush.msra.mxu0 0.0
    %206 = vmatpush.msra.mxu0 0.0
    %207 = vmatpush.msra.mxu0 0.0
    %208 = vmatpush.msra.mxu0 0.0
    %209 = vmatpush.msra.mxu0 0.0
    %210 = vmatpush.msra.mxu0 0.0
    %211 = vmatpush.msra.mxu0 0.0
    %212 = vmatpush.msra.mxu0 0.0
    %213 = vmatpush.msra.mxu0 %v62
    %214 = vmatpush.msra.mxu0 %v61
    %215 = vmatpush.msra.mxu0 %v60
    %216 = vmatpush.msra.mxu0 %v59
    %217 = vmatmul.f32.gmra.mxu0 %v196
    %v218 = vpop.f32.mrf.mxu0
    %v219 = vadd.f32 0.0, %v218
    %220 = vmatmul.f32.gmra.mxu0 %v199
    %v221 = vpop.f32.mrf.mxu0
    %v222 = vadd.f32 0.0, %v221
    %223 = vdwg.mxu0
    %v224 = vperm.slane %v69, 0
    %225 = vmatpush.msra.mxu0 0.0
    %226 = vmatpush.msra.mxu0 0.0
    %227 = vmatpush.msra.mxu0 0.0
    %228 = vmatpush.msra.mxu0 0.0
    %229 = vmatpush.msra.mxu0 0.0
    %230 = vmatpush.msra.mxu0 0.0
    %231 = vmatpush.msra.mxu0 0.0
    %232 = vmatpush.msra.mxu0 0.0
    %233 = vmatpush.msra.mxu0 0.0
    %234 = vmatpush.msra.mxu0 0.0
    %235 = vmatpush.msra.mxu0 0.0
    %236 = vmatpush.msra.mxu0 0.0
    %237 = vmatpush.msra.mxu0 0.0
    %238 = vmatpush.msra.mxu0 0.0
    %239 = vmatpush.msra.mxu0 %v222
    %240 = vmatpush.msra.mxu0 %v219
    %241 = vmatmul.f32.gmra.mxu0 %v109
    %v242 = vpop.f32.mrf.mxu0
    %v243 = vadd.f32 %v224, %v242
    %244 = vmatmul.f32.gmra.mxu0 %v112
    %v245 = vpop.f32.mrf.mxu0
    %v246 = vadd.f32 %v224, %v245
    %247 = vdwg.mxu0
    %v248 = vmax.f32 %v243, 0.0
    %v249 = vmax.f32 %v246, 0.0
    %v250 = vadd.f32 %v192, %v248
    %v251 = vadd.f32 %v193, %v249
    %v253 = vsel %vm194, %v250, 0
    %v256 = vsel %vm194, %v251, 0
    %258 = vmatpush.msra.mxu0 0.0
    %259 = vmatpush.msra.mxu0 0.0
    %260 = vmatpush.msra.mxu0 0.0
    %261 = vmatpush.msra.mxu0 0.0
    %262 = vmatpush.msra.mxu0 0.0
    %263 = vmatpush.msra.mxu0 0.0
    %264 = vmatpush.msra.mxu0 0.0
    %265 = vmatpush.msra.mxu0 0.0
    %266 = vmatpush.msra.mxu0 0.0
    %267 = vmatpush.msra.mxu0 0.0
    %268 = vmatpush.msra.mxu0 0.0
    %269 = vmatpush.msra.mxu0 0.0
    %270 = vmatpush.msra.mxu0 %v66
    %271 = vmatpush.msra.mxu0 %v65
    %272 = vmatpush.msra.mxu0 %v64
    %273 = vmatpush.msra.mxu0 %v63
    %274 = vmatmul.f32.gmra.mxu0 %v253
    %v275 = vpop.f32.mrf.mxu0
    %v276 = vadd.f32 0.0, %v275
    %277 = vmatmul.f32.gmra.mxu0 %v256
    %v278 = vpop.f32.mrf.mxu0
    %v279 = vadd.f32 0.0, %v278
    %280 = vdwg.mxu0
    %281 = vmatpush.xpose.msra.mxu0 0.0
    %282 = vmatpush.xpose.msra.mxu0 0.0
    %283 = vmatpush.xpose.msra.mxu0 0.0
    %284 = vmatpush.xpose.msra.mxu0 0.0
    %285 = vmatpush.xpose.msra.mxu0 0.0
    %286 = vmatpush.xpose.msra.mxu0 0.0
    %287 = vmatpush.xpose.msra.mxu0 0.0
    %288 = vmatpush.xpose.msra.mxu0 0.0
    %289 = vmatpush.xpose.msra.mxu0 0.0
    %290 = vmatpush.xpose.msra.mxu0 0.0
    %291 = vmatpush.xpose.msra.mxu0 0.0
    %292 = vmatpush.xpose.msra.mxu0 0.0
    %293 = vmatpush.xpose.msra.mxu0 0.0
    %294 = vmatpush.xpose.msra.mxu0 0.0
    %295 = vmatpush.xpose.msra.mxu0 %v279
    %296 = vmatpush.xpose.msra.mxu0 %v276
    %297 = vmatmul.f32.gmra.mxu0 %v74
    %v298 = vpop.f32.mrf.mxu0
    %v299 = vadd.f32 0.0, %v298
    %300 = vdwg.mxu0
    %301 = vmatpush.xpose.msra.mxu0 0.0
    %302 = vmatpush.xpose.msra.mxu0 0.0
    %303 = vmatpush.xpose.msra.mxu0 0.0
    %304 = vmatpush.xpose.msra.mxu0 0.0
    %305 = vmatpush.xpose.msra.mxu0 0.0
    %306 = vmatpush.xpose.msra.mxu0 0.0
    %307 = vmatpush.xpose.msra.mxu0 0.0
    %308 = vmatpush.xpose.msra.mxu0 0.0
    %309 = vmatpush.xpose.msra.mxu0 0.0
    %310 = vmatpush.xpose.msra.mxu0 0.0
    %311 = vmatpush.xpose.msra.mxu0 0.0
    %312 = vmatpush.xpose.msra.mxu0 0.0
    %313 = vmatpush.xpose.msra.mxu0 0.0
    %314 = vmatpush.xpose.msra.mxu0 0.0
    %315 = vmatpush.xpose.msra.mxu0 0.0
    %316 = vmatpush.xpose.msra.mxu0 %v75
    %317 = vmatmul.f32.gmra.mxu0 %v276
    %v318 = vpop.f32.mrf.mxu0
    %v319 = vadd.f32 0.0, %v318
    %320 = vmatmul.f32.gmra.mxu0 %v279
    %v321 = vpop.f32.mrf.mxu0
    %v322 = vadd.f32 0.0, %v321
    %323 = vdwg.mxu0
    %325 = vset.pattern.permute.xlu0 0
    %326 = vperm.xlu0 %325, %v319
    %v327 = vpop.permute.xlu0 %326
    %330 = vset.pattern.permute.xlu0 0
    %331 = vperm.xlu0 %330, %v322
    %v332 = vpop.permute.xlu0 %331
    %v334 = vperm.slane %v299, 0
    %v335 = vadd.f32 %v327, %v334
    %v336 = vadd.f32 %v332, %v334
    %vm337 = vcmp.gt.f32.partialorder %v335, 0.0
    %vm338 = vcmp.gt.f32.partialorder %v336, 0.0
    %v339 = vmul.f32 %v335, 0.2
    %v340 = vmul.f32 %v336, 0.2
    %v341 = vsel %vm337, %v335, %v339
    %v342 = vsel %vm338, %v336, %v340
    %vm343 = vcmp.gt.f32.partialorder %v54, 0.0
    %vm344 = vcmp.gt.f32.partialorder %v55, 0.0
    %v345 = vsel %vm343, %v341, -1e+09
    %v346 = vsel %vm344, %v342, -1e+09
    %v347 = vsel %vm107, %v345, -inf
    %348 = vmax.xlane.f32.xlu0 %v347
    %v349 = vpop.xlane.xlu0 %348
    %v350 = vsel %vm107, %v346, -inf
    %351 = vmax.xlane.f32.xlu0 %v350
    %v352 = vpop.xlane.xlu0 %351
    %v353 = vsub.f32 %v345, %v349
    %v354 = vsub.f32 %v346, %v352
    %v355 = vmul.f32 %v353, 1.442695
    %v356 = vpow.pop %v355
    %v357 = vmul.f32 %v354, 1.442695
    %v358 = vpow.pop %v357
    %v359 = vsel %vm107, %v356, 0.0
    %360 = vadd.xlane.f32.xlu0 %v359
    %v361 = vpop.xlane.xlu0 %360
    %v362 = vsel %vm107, %v358, 0.0
    %363 = vadd.xlane.f32.xlu0 %v362
    %v364 = vpop.xlane.xlu0 %363
    %v365 = vrcp.pop %v361
    %v366 = vmul.f32 %v361, %v365
    %v367 = vsub.f32 1.0, %v366
    %v368 = vmul.f32 %v365, %v367
    %v369 = vadd.f32 %v365, %v368
    %vm370 = vweird.f32 %v361
    %vm371 = vweird.f32 %v365
    %vm372 = vmor %vm370, %vm371
    %v373 = vsel %vm372, %v365, %v369
    %v374 = vand.u32 2147483647, %v361
    %vm375 = vcmp.eq.f32.partialorder %v374, 8.507059e+37
    %v376 = vand.u32 %v361, 2147483648
    %v377 = vor.u32 1.1754944e-38, %v376
    %v378 = vsel %vm375, %v377, %v373
    %v379 = vmul.f32 1.0, %v378
    %v380 = vrcp.pop %v364
    %v381 = vmul.f32 %v364, %v380
    %v382 = vsub.f32 1.0, %v381
    %v383 = vmul.f32 %v380, %v382
    %v384 = vadd.f32 %v380, %v383
    %vm385 = vweird.f32 %v364
    %vm386 = vweird.f32 %v380
    %vm387 = vmor %vm385, %vm386
    %v388 = vsel %vm387, %v380, %v384
    %v389 = vand.u32 2147483647, %v364
    %vm390 = vcmp.eq.f32.partialorder %v389, 8.507059e+37
    %v391 = vand.u32 %v364, 2147483648
    %v392 = vor.u32 1.1754944e-38, %v391
    %v393 = vsel %vm390, %v392, %v388
    %v394 = vmul.f32 1.0, %v393
    %v395 = vmul.f32 %v356, %v379
    %v396 = vmul.f32 %v358, %v394
    %v398 = vsel %vm107, %v395, 0
    %v401 = vsel %vm107, %v396, 0
    %403 = vmatpush.msra.mxu0 0.0
    %404 = vmatpush.msra.mxu0 0.0
    %405 = vmatpush.msra.mxu0 0.0
    %406 = vmatpush.msra.mxu0 0.0
    %407 = vmatpush.msra.mxu0 0.0
    %408 = vmatpush.msra.mxu0 0.0
    %409 = vmatpush.msra.mxu0 0.0
    %410 = vmatpush.msra.mxu0 0.0
    %411 = vmatpush.msra.mxu0 0.0
    %412 = vmatpush.msra.mxu0 0.0
    %413 = vmatpush.msra.mxu0 0.0
    %414 = vmatpush.msra.mxu0 0.0
    %415 = vmatpush.msra.mxu0 0.0
    %416 = vmatpush.msra.mxu0 0.0
    %417 = vmatpush.msra.mxu0 %v279
    %418 = vmatpush.msra.mxu0 %v276
    %419 = vmatmul.f32.gmra.mxu0 %v398
    %v420 = vpop.f32.mrf.mxu0
    %v421 = vadd.f32 0.0, %v420
    %422 = vmatmul.f32.gmra.mxu0 %v401
    %v423 = vpop.f32.mrf.mxu0
    %v424 = vadd.f32 0.0, %v423
    %425 = vdwg.mxu0
    %426 = vst.msk [vmem:[#allocation2] sm:$0xff] %vm194, %v421
    %427 = vst.msk [vmem:[#allocation2 + $0x8] sm:$0xff] %vm194, %v424
    %428 = vset.pattern.permute.xlu0 1
    %429 = vperm.xlu0 %428, %v319
    %v430 = vpop.permute.xlu0 %429
    %432 = vset.pattern.permute.xlu0 1
    %433 = vperm.xlu0 %432, %v322
    %v434 = vpop.permute.xlu0 %433
    %v436 = vperm.slane %v299, 1
    %v437 = vadd.f32 %v430, %v436
    %v438 = vadd.f32 %v434, %v436
    %vm439 = vcmp.gt.f32.partialorder %v437, 0.0
    %vm440 = vcmp.gt.f32.partialorder %v438, 0.0
    %v441 = vmul.f32 %v437, 0.2
    %v442 = vmul.f32 %v438, 0.2
    %v443 = vsel %vm439, %v437, %v441
    %v444 = vsel %vm440, %v438, %v442
    %v445 = vsel %vm343, %v443, -1e+09
    %v446 = vsel %vm344, %v444, -1e+09
    %v447 = vsel %vm107, %v445, -inf
    %448 = vmax.xlane.f32.xlu0 %v447
    %v449 = vpop.xlane.xlu0 %448
    %v450 = vsel %vm107, %v446, -inf
    %451 = vmax.xlane.f32.xlu0 %v450
    %v452 = vpop.xlane.xlu0 %451
    %v453 = vsub.f32 %v445, %v449
    %v454 = vsub.f32 %v446, %v452
    %v455 = vmul.f32 %v453, 1.442695
    %v456 = vpow.pop %v455
    %v457 = vmul.f32 %v454, 1.442695
    %v458 = vpow.pop %v457
    %v459 = vsel %vm107, %v456, 0.0
    %460 = vadd.xlane.f32.xlu0 %v459
    %v461 = vpop.xlane.xlu0 %460
    %v462 = vsel %vm107, %v458, 0.0
    %463 = vadd.xlane.f32.xlu0 %v462
    %v464 = vpop.xlane.xlu0 %463
    %v465 = vrcp.pop %v461
    %v466 = vmul.f32 %v461, %v465
    %v467 = vsub.f32 1.0, %v466
    %v468 = vmul.f32 %v465, %v467
    %v469 = vadd.f32 %v465, %v468
    %vm470 = vweird.f32 %v461
    %vm471 = vweird.f32 %v465
    %vm472 = vmor %vm470, %vm471
    %v473 = vsel %vm472, %v465, %v469
    %v474 = vand.u32 2147483647, %v461
    %vm475 = vcmp.eq.f32.partialorder %v474, 8.507059e+37
    %v476 = vand.u32 %v461, 2147483648
    %v477 = vor.u32 1.1754944e-38, %v476
    %v478 = vsel %vm475, %v477, %v473
    %v479 = vmul.f32 1.0, %v478
    %v480 = vrcp.pop %v464
    %v481 = vmul.f32 %v464, %v480
    %v482 = vsub.f32 1.0, %v481
    %v483 = vmul.f32 %v480, %v482
    %v484 = vadd.f32 %v480, %v483
    %vm485 = vweird.f32 %v464
    %vm486 = vweird.f32 %v480
    %vm487 = vmor %vm485, %vm486
    %v488 = vsel %vm487, %v480, %v484
    %v489 = vand.u32 2147483647, %v464
    %vm490 = vcmp.eq.f32.partialorder %v489, 8.507059e+37
    %v491 = vand.u32 %v464, 2147483648
    %v492 = vor.u32 1.1754944e-38, %v491
    %v493 = vsel %vm490, %v492, %v488
    %v494 = vmul.f32 1.0, %v493
    %v495 = vmul.f32 %v456, %v479
    %v496 = vmul.f32 %v458, %v494
    %499 = vrot.lane.b32.xlu0 %v276, 96
    %v500 = vpop.permute.xlu0 %499
    %501 = vrot.lane.b32.xlu0 %v279, 96
    %v502 = vpop.permute.xlu0 %501
    %v506 = vsel %vm107, %v495, 0
    %v509 = vsel %vm107, %v496, 0
    %511 = vmatpush.msra.mxu0 0.0
    %512 = vmatpush.msra.mxu0 0.0
    %513 = vmatpush.msra.mxu0 0.0
    %514 = vmatpush.msra.mxu0 0.0
    %515 = vmatpush.msra.mxu0 0.0
    %516 = vmatpush.msra.mxu0 0.0
    %517 = vmatpush.msra.mxu0 0.0
    %518 = vmatpush.msra.mxu0 0.0
    %519 = vmatpush.msra.mxu0 0.0
    %520 = vmatpush.msra.mxu0 0.0
    %521 = vmatpush.msra.mxu0 0.0
    %522 = vmatpush.msra.mxu0 0.0
    %523 = vmatpush.msra.mxu0 0.0
    %524 = vmatpush.msra.mxu0 0.0
    %525 = vmatpush.msra.mxu0 %v502
    %526 = vmatpush.msra.mxu0 %v500
    %527 = vmatmul.f32.gmra.mxu0 %v506
    %v528 = vpop.f32.mrf.mxu0
    %v529 = vadd.f32 0.0, %v528
    %530 = vmatmul.f32.gmra.mxu0 %v509
    %v531 = vpop.f32.mrf.mxu0
    %v532 = vadd.f32 0.0, %v531
    %533 = vdwg.mxu0
    %536 = vrot.lane.b32.xlu0 %v529, 32
    %v537 = vpop.permute.xlu0 %536
    %538 = vrot.lane.b32.xlu0 %v532, 32
    %v539 = vpop.permute.xlu0 %538
    %vm542 = vcmask 523520
    %543 = vst.msk [vmem:[#allocation2] sm:$0xff] %vm542, %v537
    %544 = vst.msk [vmem:[#allocation2 + $0x8] sm:$0xff] %vm542, %v539
    %545 = vset.pattern.permute.xlu0 2
    %546 = vperm.xlu0 %545, %v319
    %v547 = vpop.permute.xlu0 %546
    %549 = vset.pattern.permute.xlu0 2
    %550 = vperm.xlu0 %549, %v322
    %v551 = vpop.permute.xlu0 %550
    %v553 = vperm.slane %v299, 2
    %v554 = vadd.f32 %v547, %v553
    %v555 = vadd.f32 %v551, %v553
    %vm556 = vcmp.gt.f32.partialorder %v554, 0.0
    %vm557 = vcmp.gt.f32.partialorder %v555, 0.0
    %v558 = vmul.f32 %v554, 0.2
    %v559 = vmul.f32 %v555, 0.2
    %v560 = vsel %vm556, %v554, %v558
    %v561 = vsel %vm557, %v555, %v559
    %v562 = vsel %vm343, %v560, -1e+09
    %v563 = vsel %vm344, %v561, -1e+09
    %v564 = vsel %vm107, %v562, -inf
    %565 = vmax.xlane.f32.xlu0 %v564
    %v566 = vpop.xlane.xlu0 %565
    %v567 = vsel %vm107, %v563, -inf
    %568 = vmax.xlane.f32.xlu0 %v567
    %v569 = vpop.xlane.xlu0 %568
    %v570 = vsub.f32 %v562, %v566
    %v571 = vsub.f32 %v563, %v569
    %v572 = vmul.f32 %v570, 1.442695
    %v573 = vpow.pop %v572
    %v574 = vmul.f32 %v571, 1.442695
    %v575 = vpow.pop %v574
    %v576 = vsel %vm107, %v573, 0.0
    %577 = vadd.xlane.f32.xlu0 %v576
    %v578 = vpop.xlane.xlu0 %577
    %v579 = vsel %vm107, %v575, 0.0
    %580 = vadd.xlane.f32.xlu0 %v579
    %v581 = vpop.xlane.xlu0 %580
    %v582 = vrcp.pop %v578
    %v583 = vmul.f32 %v578, %v582
    %v584 = vsub.f32 1.0, %v583
    %v585 = vmul.f32 %v582, %v584
    %v586 = vadd.f32 %v582, %v585
    %vm587 = vweird.f32 %v578
    %vm588 = vweird.f32 %v582
    %vm589 = vmor %vm587, %vm588
    %v590 = vsel %vm589, %v582, %v586
    %v591 = vand.u32 2147483647, %v578
    %vm592 = vcmp.eq.f32.partialorder %v591, 8.507059e+37
    %v593 = vand.u32 %v578, 2147483648
    %v594 = vor.u32 1.1754944e-38, %v593
    %v595 = vsel %vm592, %v594, %v590
    %v596 = vmul.f32 1.0, %v595
    %v597 = vrcp.pop %v581
    %v598 = vmul.f32 %v581, %v597
    %v599 = vsub.f32 1.0, %v598
    %v600 = vmul.f32 %v597, %v599
    %v601 = vadd.f32 %v597, %v600
    %vm602 = vweird.f32 %v581
    %vm603 = vweird.f32 %v597
    %vm604 = vmor %vm602, %vm603
    %v605 = vsel %vm604, %v597, %v601
    %v606 = vand.u32 2147483647, %v581
    %vm607 = vcmp.eq.f32.partialorder %v606, 8.507059e+37
    %v608 = vand.u32 %v581, 2147483648
    %v609 = vor.u32 1.1754944e-38, %v608
    %v610 = vsel %vm607, %v609, %v605
    %v611 = vmul.f32 1.0, %v610
    %v612 = vmul.f32 %v573, %v596
    %v613 = vmul.f32 %v575, %v611
    %614 = vrot.lane.b32.xlu0 %v276, 64
    %v615 = vpop.permute.xlu0 %614
    %616 = vrot.lane.b32.xlu0 %v279, 64
    %v617 = vpop.permute.xlu0 %616
    %v621 = vsel %vm107, %v612, 0
    %v624 = vsel %vm107, %v613, 0
    %626 = vmatpush.msra.mxu0 0.0
    %627 = vmatpush.msra.mxu0 0.0
    %628 = vmatpush.msra.mxu0 0.0
    %629 = vmatpush.msra.mxu0 0.0
    %630 = vmatpush.msra.mxu0 0.0
    %631 = vmatpush.msra.mxu0 0.0
    %632 = vmatpush.msra.mxu0 0.0
    %633 = vmatpush.msra.mxu0 0.0
    %634 = vmatpush.msra.mxu0 0.0
    %635 = vmatpush.msra.mxu0 0.0
    %636 = vmatpush.msra.mxu0 0.0
    %637 = vmatpush.msra.mxu0 0.0
    %638 = vmatpush.msra.mxu0 0.0
    %639 = vmatpush.msra.mxu0 0.0
    %640 = vmatpush.msra.mxu0 %v617
    %641 = vmatpush.msra.mxu0 %v615
    %642 = vmatmul.f32.gmra.mxu0 %v621
    %v643 = vpop.f32.mrf.mxu0
    %v644 = vadd.f32 0.0, %v643
    %645 = vmatmul.f32.gmra.mxu0 %v624
    %v646 = vpop.f32.mrf.mxu0
    %v647 = vadd.f32 0.0, %v646
    %648 = vdwg.mxu0
    %651 = vrot.lane.b32.xlu0 %v644, 64
    %v652 = vpop.permute.xlu0 %651
    %653 = vrot.lane.b32.xlu0 %v647, 64
    %v654 = vpop.permute.xlu0 %653
    %vm657 = vcmask 785920
    %658 = vst.msk [vmem:[#allocation2] sm:$0xff] %vm657, %v652
    %659 = vst.msk [vmem:[#allocation2 + $0x8] sm:$0xff] %vm657, %v654
    %660 = vset.pattern.permute.xlu0 3
    %661 = vperm.xlu0 %660, %v319
    %v662 = vpop.permute.xlu0 %661
    %664 = vset.pattern.permute.xlu0 3
    %665 = vperm.xlu0 %664, %v322
    %v666 = vpop.permute.xlu0 %665
    %v668 = vperm.slane %v299, 3
    %v669 = vadd.f32 %v662, %v668
    %v670 = vadd.f32 %v666, %v668
    %vm671 = vcmp.gt.f32.partialorder %v669, 0.0
    %vm672 = vcmp.gt.f32.partialorder %v670, 0.0
    %v673 = vmul.f32 %v669, 0.2
    %v674 = vmul.f32 %v670, 0.2
    %v675 = vsel %vm671, %v669, %v673
    %v676 = vsel %vm672, %v670, %v674
    %v677 = vsel %vm343, %v675, -1e+09
    %v678 = vsel %vm344, %v676, -1e+09
    %v679 = vsel %vm107, %v677, -inf
    %680 = vmax.xlane.f32.xlu0 %v679
    %v681 = vpop.xlane.xlu0 %680
    %v682 = vsel %vm107, %v678, -inf
    %683 = vmax.xlane.f32.xlu0 %v682
    %v684 = vpop.xlane.xlu0 %683
    %v685 = vsub.f32 %v677, %v681
    %v686 = vsub.f32 %v678, %v684
    %v687 = vmul.f32 %v685, 1.442695
    %v688 = vpow.pop %v687
    %v689 = vmul.f32 %v686, 1.442695
    %v690 = vpow.pop %v689
    %v691 = vsel %vm107, %v688, 0.0
    %692 = vadd.xlane.f32.xlu0 %v691
    %v693 = vpop.xlane.xlu0 %692
    %v694 = vsel %vm107, %v690, 0.0
    %695 = vadd.xlane.f32.xlu0 %v694
    %v696 = vpop.xlane.xlu0 %695
    %v697 = vrcp.pop %v693
    %v698 = vmul.f32 %v693, %v697
    %v699 = vsub.f32 1.0, %v698
    %v700 = vmul.f32 %v697, %v699
    %v701 = vadd.f32 %v697, %v700
    %vm702 = vweird.f32 %v693
    %vm703 = vweird.f32 %v697
    %vm704 = vmor %vm702, %vm703
    %v705 = vsel %vm704, %v697, %v701
    %v706 = vand.u32 2147483647, %v693
    %vm707 = vcmp.eq.f32.partialorder %v706, 8.507059e+37
    %v708 = vand.u32 %v693, 2147483648
    %v709 = vor.u32 1.1754944e-38, %v708
    %v710 = vsel %vm707, %v709, %v705
    %v711 = vmul.f32 1.0, %v710
    %v712 = vrcp.pop %v696
    %v713 = vmul.f32 %v696, %v712
    %v714 = vsub.f32 1.0, %v713
    %v715 = vmul.f32 %v712, %v714
    %v716 = vadd.f32 %v712, %v715
    %vm717 = vweird.f32 %v696
    %vm718 = vweird.f32 %v712
    %vm719 = vmor %vm717, %vm718
    %v720 = vsel %vm719, %v712, %v716
    %v721 = vand.u32 2147483647, %v696
    %vm722 = vcmp.eq.f32.partialorder %v721, 8.507059e+37
    %v723 = vand.u32 %v696, 2147483648
    %v724 = vor.u32 1.1754944e-38, %v723
    %v725 = vsel %vm722, %v724, %v720
    %v726 = vmul.f32 1.0, %v725
    %v727 = vmul.f32 %v688, %v711
    %v728 = vmul.f32 %v690, %v726
    %729 = vrot.lane.b32.xlu0 %v276, 32
    %v730 = vpop.permute.xlu0 %729
    %731 = vrot.lane.b32.xlu0 %v279, 32
    %v732 = vpop.permute.xlu0 %731
    %v736 = vsel %vm107, %v727, 0
    %v739 = vsel %vm107, %v728, 0
    %741 = vmatpush.msra.mxu0 0.0
    %742 = vmatpush.msra.mxu0 0.0
    %743 = vmatpush.msra.mxu0 0.0
    %744 = vmatpush.msra.mxu0 0.0
    %745 = vmatpush.msra.mxu0 0.0
    %746 = vmatpush.msra.mxu0 0.0
    %747 = vmatpush.msra.mxu0 0.0
    %748 = vmatpush.msra.mxu0 0.0
    %749 = vmatpush.msra.mxu0 0.0
    %750 = vmatpush.msra.mxu0 0.0
    %751 = vmatpush.msra.mxu0 0.0
    %752 = vmatpush.msra.mxu0 0.0
    %753 = vmatpush.msra.mxu0 0.0
    %754 = vmatpush.msra.mxu0 0.0
    %755 = vmatpush.msra.mxu0 %v732
    %756 = vmatpush.msra.mxu0 %v730
    %757 = vmatmul.f32.gmra.mxu0 %v736
    %v758 = vpop.f32.mrf.mxu0
    %v759 = vadd.f32 0.0, %v758
    %760 = vmatmul.f32.gmra.mxu0 %v739
    %v761 = vpop.f32.mrf.mxu0
    %v762 = vadd.f32 0.0, %v761
    %763 = vdwg.mxu0
    %766 = vrot.lane.b32.xlu0 %v759, 96
    %v767 = vpop.permute.xlu0 %766
    %768 = vrot.lane.b32.xlu0 %v762, 96
    %v769 = vpop.permute.xlu0 %768
    %vm772 = vcmask 1048320
    %773 = vst.msk [vmem:[#allocation2] sm:$0xff] %vm772, %v767
    %774 = vst.msk [vmem:[#allocation2 + $0x8] sm:$0xff] %vm772, %v769
    %v775 = vld [vmem:[#allocation2] sm:$0xff]
    %v776 = vld [vmem:[#allocation2 + $0x8] sm:$0xff]
    %v777 = vperm.slane %v70, 0
    %v778 = vmul.f32 %v775, %v777
    %v779 = vmul.f32 %v776, %v777
    %v780 = vperm.slane %v71, 0
    %v781 = vadd.f32 %v778, %v780
    %v782 = vadd.f32 %v779, %v780
    %vm783 = vcmp.gt.f32.partialorder %v781, 0.0
    %vm784 = vcmp.gt.f32.partialorder %v782, 0.0
    %v785 = vmin.f32 %v781, 0.0
    %v786 = vmin.f32 %v782, 0.0
    %v787 = vmul.f32 %v785, 1.442695
    %v788 = vpow.pop %v787
    %v789 = vmul.f32 %v786, 1.442695
    %v790 = vpow.pop %v789
    %v791 = vsub.f32 %v788, 1.0
    %v792 = vsub.f32 %v790, 1.0
    %v793 = vsel %vm783, %v781, %v791
    %v794 = vsel %vm784, %v782, %v792
    %796 = vset.pattern.permute.xlu0 0
    %797 = vperm.xlu0 %796, %v73
    %v798 = vpop.permute.xlu0 %797
    %800 = vmatpush.xpose.msra.mxu0 0.0
    %801 = vmatpush.xpose.msra.mxu0 0.0
    %802 = vmatpush.xpose.msra.mxu0 0.0
    %803 = vmatpush.xpose.msra.mxu0 0.0
    %804 = vmatpush.xpose.msra.mxu0 0.0
    %805 = vmatpush.xpose.msra.mxu0 0.0
    %806 = vmatpush.xpose.msra.mxu0 0.0
    %807 = vmatpush.xpose.msra.mxu0 0.0
    %808 = vmatpush.xpose.msra.mxu0 0.0
    %809 = vmatpush.xpose.msra.mxu0 0.0
    %810 = vmatpush.xpose.msra.mxu0 0.0
    %811 = vmatpush.xpose.msra.mxu0 0.0
    %812 = vmatpush.xpose.msra.mxu0 0.0
    %813 = vmatpush.xpose.msra.mxu0 0.0
    %814 = vmatpush.xpose.msra.mxu0 %v794
    %815 = vmatpush.xpose.msra.mxu0 %v793
    %816 = vmatmul.f32.gmra.mxu0 %v72
    %v817 = vpop.f32.mrf.mxu0
    %v818 = vadd.f32 %v798, %v817
    %819 = vdwg.mxu0
    %vm820 = vcmask 122880
    %821 = vst.msk [vmem:[#allocation8] sm:$0x1] %vm820, %v818
    // Predicated region
    $region26: #{tpu_custom_call.1} parent=1 // pred_check
      _
    $region27: #{tpu_custom_call.1} parent=1 // pred_check_branch
      %823 = sbr.rel (0) target = $region29
    $region28: #{tpu_custom_call.1} parent=1 // pred_region
      %825 = vsyncadd [#allocation5], 0
      %s827 = sshll.u32 [#allocation8], 4
      %s828 = int_to_ptr.vmem [resolvable:$true] %s827
      %s829 = sshll.u32 %s4, 4
      %s830 = int_to_ptr.hbm [resolvable:$true] %s829
      %832 = dma.vmem_to_hbm [thread:$0]  %s828, 16, %s830, [#allocation5]
    $region29: #{tpu_custom_call.1} parent=1 // pred_fallthru
      _
    // Predicated region
    $region30: #{tpu_custom_call.1} parent=1 // pred_check
      _
    $region31: #{tpu_custom_call.1} parent=1 // pred_check_branch
      %834 = sbr.rel (0) target = $region33
    $region32: #{tpu_custom_call.1} parent=1 // pred_region
      %836 = dma.done [#allocation5], 16
    $region33: #{tpu_custom_call.1} parent=1 // pred_fallthru
      _
    %837 = vsyncpa [#allocation4], 1
    %838 = vsyncpa [#allocation7], 1
    %839 = vsyncpa [#allocation5], 1

</llo_original>
